<compile_context>
chip_gen: v6e
topology: v6e:2x2x1
jax: 0.10.0
libtpu: 0.0.40
codegen_flags: <defaults>
</compile_context>

<pallas_src>
import functools

import jax
import jax.numpy as jnp
from jax.experimental import pallas as pl
from jax.experimental.pallas import tpu as pltpu


# -----------------------------------------------------------------------------
# Chip-aware VMEM budgeting & tile selection
# -----------------------------------------------------------------------------
def _vmem_capacity_bytes() -> int:
    """Per-TensorCore VMEM capacity; conservative (v7x, 64 MiB) fallback."""
    try:
        info = pltpu.get_tpu_info()
        for attr in ("vmem_capacity_bytes", "vmem_size_bytes", "vmem_bytes"):
            cap = getattr(info, attr, None)
            if cap:
                return int(cap)
    except Exception:
        pass
    return 64 * 1024 * 1024


def _vmem_limit_and_budget():
    cap = _vmem_capacity_bytes()
    # Scoped-VMEM limit handed to Mosaic: ~75% of physical, capped at 96 MiB
    # (v5e/v6e: 96 of 128 MiB; v7x: 48 of 64 MiB per TensorCore).
    limit = min(cap * 3 // 4, 96 * 1024 * 1024)
    # Tile-selection budget: half the limit, leaving headroom for compiler
    # scratch, semaphores and f32 intermediates.
    return limit, limit // 2


def _fit_tile(n: int, max_tile: int, aligns=(8,)) -> int:
    """Largest divisor of n that is <= max_tile.  Prefers an alignment from
    `aligns` (in order) as long as the aligned choice is at least half the
    largest fitting divisor.  Never exceeds max_tile (no silent full-extent
    fallback that could blow past the VMEM budget)."""
    max_tile = max(1, min(int(n), int(max_tile)))
    divisors = [t for t in range(1, max_tile + 1) if n % t == 0]
    largest = divisors[-1]
    for a in aligns:
        aligned = [t for t in divisors if t % a == 0]
        if aligned and aligned[-1] * 2 >= largest:
            return aligned[-1]
    return largest


# -----------------------------------------------------------------------------
# Kernel 1: x = prompts + positional_embedding  (broadcast over batch)
# -----------------------------------------------------------------------------
def _add_pos_kernel(x_ref, pos_ref, o_ref):
    # x_ref: (tb, ts, d)   pos_ref: (ts, d)   o_ref: (tb, ts, d)
    o_ref[...] = x_ref[...] + pos_ref[...]


def add_positional_embedding(prompts, pos_emb):
    b, s, d = prompts.shape
    itemsize = prompts.dtype.itemsize
    # Host-side cast == positional_embedding.type(self.dtype); removes the
    # per-iteration astype (VALU work, matters on v5e) and halves the resident
    # pos block when running in bf16.
    pos = pos_emb.astype(prompts.dtype)

    vmem_limit, budget = _vmem_limit_and_budget()

    def step_bytes(tb, ts):
        # double-buffered input + output blocks, plus double-buffered pos block
        return 4 * tb * ts * d * itemsize + 2 * ts * d * itemsize

    # 1) Sequence tile: keep the full sequence per block unless even an 8-row
    #    batch tile would overflow the budget.
    ts = s
    min_tb = min(b, 8)
    if step_bytes(min_tb, s) > budget:
        ts = _fit_tile(s, max(1, budget // ((4 * min_tb + 2) * d * itemsize)),
                       aligns=(8,))
    # 2) Batch tile: largest divisor of b whose block fits the budget.
    max_tb = max(1, (budget - 2 * ts * d * itemsize) // (4 * ts * d * itemsize))
    tb = _fit_tile(b, max_tb, aligns=(8,))
    # 3) Keep >= 2 grid steps when possible so both v7x TensorCores get work.
    if (b // tb) * (s // ts) < 2:
        if tb % 2 == 0 and tb > 1:
            tb //= 2
        elif ts % 2 == 0 and ts > 1:
            ts //= 2

    grid = (b // tb, s // ts)
    bytes_accessed = 2 * b * s * d * itemsize + s * d * itemsize
    return pl.pallas_call(
        _add_pos_kernel,
        out_shape=jax.ShapeDtypeStruct((b, s, d), prompts.dtype),
        grid=grid,
        in_specs=[
            pl.BlockSpec((tb, ts, d), lambda i, j: (i, j, 0)),  # streamed
            pl.BlockSpec((ts, d), lambda i, j: (j, 0)),          # pos table
        ],
        out_specs=pl.BlockSpec((tb, ts, d), lambda i, j: (i, j, 0)),
        compiler_params=pltpu.CompilerParams(
            dimension_semantics=("parallel", "parallel"),
            vmem_limit_bytes=vmem_limit,
        ),
        cost_estimate=pl.CostEstimate(
            flops=b * s * d, transcendentals=0,
            bytes_accessed=int(bytes_accessed)),
    )(prompts, pos)


# -----------------------------------------------------------------------------
# Kernel 2: fused ln_final (LayerNorm) + text_projection on the EOT rows only
# -----------------------------------------------------------------------------
def _ln_proj_kernel(x_ref, gamma_ref, beta_ref, proj_ref, o_ref, *, eps):
    # x_ref: (tb, d)  gamma/beta: (1, d)  proj_ref: (d, e)  o_ref: (tb, e)
    x = x_ref[...].astype(jnp.float32)
    mean = jnp.mean(x, axis=-1, keepdims=True)
    xc = x - mean
    var = jnp.mean(xc * xc, axis=-1, keepdims=True)
    inv = jax.lax.rsqrt(var + eps)                                   # EUP slot
    xn = xc * inv * gamma_ref[...].astype(jnp.float32) \
        + beta_ref[...].astype(jnp.float32)
    # Cast back to the activation dtype (PyTorch: .type(self.dtype)); with bf16
    # activations + bf16 projection this is the native bf16 MXU fast path,
    # while the accumulator stays f32 via preferred_element_type.
    y = jnp.dot(xn.astype(x_ref.dtype), proj_ref[...],
                preferred_element_type=jnp.float32)
    o_ref[...] = y.astype(o_ref.dtype)


def eot_layernorm_project(x, tokenized_prompts, ln_weight, ln_bias,
                          text_projection, *, eps=1e-5):
    """x: (B, S, D) transformer output; tokenized_prompts: (B, S) int32;
    ln_weight/ln_bias: (D,); text_projection: (D, E) -> (B, E)."""
    b, s, d = x.shape
    e = text_projection.shape[1]
    out_dtype = jnp.result_type(x.dtype, text_projection.dtype)

    # EOT gather.  LayerNorm is per-token, so ln(x)[b, eot_b] == ln(x[b, eot_b])
    # and only the argmax rows are needed; the kernel never reads the other
    # S-1 rows per prompt.
    # TODO(synk): absorb this gather into the kernel with
    #             PrefetchScalarGridSpec(num_scalar_prefetch=1) + a manual DMA
    #             row gather (low priority: saves one (B, D) HBM round trip).
    eot = jnp.argmax(tokenized_prompts, axis=-1)                     # (B,)
    x_eot = x[jnp.arange(b), eot]                                    # (B, D)

    gamma = ln_weight.reshape(1, d)
    beta = ln_bias.reshape(1, d)

    vmem_limit, budget = _vmem_limit_and_budget()
    x_isz = x_eot.dtype.itemsize
    o_isz = jnp.dtype(out_dtype).itemsize
    fixed = d * e * text_projection.dtype.itemsize + 4 * d * 4       # proj + ln
    per_row = 2 * d * x_isz + 2 * e * o_isz                          # dbl-buffered
    max_tb = max(1, (budget - fixed) // per_row)
    # MXU-aligned row tiles: 256 matches the v6e/v7x 256x256 MXU (also a
    # multiple of v5e's 128x128); tiles up to 1024 rows amortize step overhead.
    tb = _fit_tile(b, min(max_tb, 1024), aligns=(256, 128, 8))
    if b // tb < 2 and tb % 2 == 0 and tb // 2 >= 256:
        tb //= 2   # give v7x's second TensorCore work when rows allow it

    grid = (b // tb,)
    bytes_accessed = (b * d * x_isz + d * e * text_projection.dtype.itemsize
                      + b * e * o_isz + 2 * d * 4)
    return pl.pallas_call(
        functools.partial(_ln_proj_kernel, eps=eps),
        out_shape=jax.ShapeDtypeStruct((b, e), out_dtype),
        grid=grid,
        in_specs=[
            pl.BlockSpec((tb, d), lambda i: (i, 0)),      # EOT rows, streamed
            pl.BlockSpec((1, d), lambda i: (0, 0)),       # ln gamma, resident
            pl.BlockSpec((1, d), lambda i: (0, 0)),       # ln beta, resident
            pl.BlockSpec((d, e), lambda i: (0, 0)),       # projection, resident
        ],
        out_specs=pl.BlockSpec((tb, e), lambda i: (i, 0)),
        compiler_params=pltpu.CompilerParams(
            dimension_semantics=("parallel",),
            vmem_limit_bytes=vmem_limit,
        ),
        cost_estimate=pl.CostEstimate(
            flops=2 * b * d * e + 10 * b * d,
            transcendentals=b,
            bytes_accessed=int(bytes_accessed)),
    )(x_eot, gamma, beta, text_projection)


# -----------------------------------------------------------------------------
# Full TextEncoder forward (minus the external CLIP transformer)
# -----------------------------------------------------------------------------
def text_encoder_forward(prompts, tokenized_prompts, positional_embedding,
                         ln_weight, ln_bias, text_projection,
                         compound_prompts_deeper_text=None):
    x = add_positional_embedding(prompts, positional_embedding)
    # The reference permutes to (S, B, D), runs the CLIP transformer with
    # compound-prompt injection, and permutes back.  The permutes are pure
    # layout and cancel around the (untranslated) transformer.
    # TODO(synk): clip_model.transformer([x, compound_prompts_deeper_text, 0])
    #             is an external CLIP submodule and is not translated; x passes
    #             through unchanged here.  When the real transformer (an XLA
    #             graph) is plugged in, either let XLA fuse this positional add
    #             into the transformer's first op, or switch kernel-1's
    #             out_specs to emit (S, B, D) directly so the permute never
    #             becomes a separate HBM read+write pass.
    del compound_prompts_deeper_text   # consumed only by the external transformer
    return eot_layernorm_project(x, tokenized_prompts, ln_weight, ln_bias,
                                 text_projection)


# -----------------------------------------------------------------------------
# Pure-JAX reference (same pipeline, PyTorch op order: LN all tokens, then gather)
# -----------------------------------------------------------------------------
def text_encoder_reference(prompts, tokenized_prompts, positional_embedding,
                           ln_weight, ln_bias, text_projection, eps=1e-5):
    x = prompts + positional_embedding.astype(prompts.dtype)
    # (external transformer omitted -- identity, matching the kernel pipeline)
    xf = x.astype(jnp.float32)
    mean = jnp.mean(xf, axis=-1, keepdims=True)
    xc = xf - mean
    var = jnp.mean(xc * xc, axis=-1, keepdims=True)
    xn = (xc * jax.lax.rsqrt(var + eps) * ln_weight + ln_bias).astype(prompts.dtype)
    eot = jnp.argmax(tokenized_prompts, axis=-1)
    sel = xn[jnp.arange(prompts.shape[0]), eot]
    return sel @ text_projection


if __name__ == "__main__":
    key = jax.random.PRNGKey(0)
    k_p, k_pe, k_g, k_b, k_tp, k_tok = jax.random.split(key, 6)

    # Small shapes consistent with CLIP text encoding, lane/sublane aligned:
    # batch of 8 prompts, sequence length 16, width 128, projection dim 128.
    B, S, D, E = 8, 16, 128, 128

    prompts = jax.random.normal(k_p, (B, S, D), dtype=jnp.float32)
    positional_embedding = 0.02 * jax.random.normal(k_pe, (S, D), dtype=jnp.float32)
    ln_weight = 1.0 + 0.1 * jax.random.normal(k_g, (D,), dtype=jnp.float32)
    ln_bias = 0.1 * jax.random.normal(k_b, (D,), dtype=jnp.float32)
    text_projection = jax.random.normal(k_tp, (D, E), dtype=jnp.float32) / jnp.sqrt(D)
    # Synthetic token ids; argmax(-1) marks the EOT position, as in CLIP.
    tokenized_prompts = jax.random.randint(k_tok, (B, S), 0, 1000, dtype=jnp.int32)

    # --- f32 path: tight check against the pure-JAX reference ----------------
    y = text_encoder_forward(prompts, tokenized_prompts, positional_embedding,
                             ln_weight, ln_bias, text_projection)
    y = jax.block_until_ready(y)
    y_ref = text_encoder_reference(prompts, tokenized_prompts, positional_embedding,
                                   ln_weight, ln_bias, text_projection)
    assert y.shape == (B, E)
    max_err = float(jnp.max(jnp.abs(y - y_ref)))
    assert jnp.allclose(y, y_ref, atol=1e-3, rtol=1e-3), f"f32 max abs err {max_err}"

    # --- bf16 path: exercises the native bf16 MXU fast path in kernel 2 ------
    prompts_bf = prompts.astype(jnp.bfloat16)
    proj_bf = text_projection.astype(jnp.bfloat16)
    y_bf = jax.block_until_ready(
        text_encoder_forward(prompts_bf, tokenized_prompts, positional_embedding,
                             ln_weight, ln_bias, proj_bf))
    y_bf_ref = text_encoder_reference(prompts_bf, tokenized_prompts,
                                      positional_embedding, ln_weight, ln_bias,
                                      proj_bf)
    assert y_bf.dtype == jnp.bfloat16
    assert jnp.allclose(y_bf.astype(jnp.float32), y_bf_ref.astype(jnp.float32),
                        atol=0.1, rtol=0.05), "bf16 path mismatch"

    print("KERNEL_OK")
</pallas_src>

<mosaic_0001>
module attributes {stable_mosaic.version = 11 : i64} {
  func.func @_add_pos_kernel(%arg0: i32, %arg1: i32, %arg2: memref<4x16x128xf32, #tpu.memory_space<vmem>>, %arg3: memref<16x128xf32, #tpu.memory_space<vmem>>, %arg4: memref<4x16x128xf32, #tpu.memory_space<vmem>>) attributes {dimension_semantics = [#tpu.dimension_semantics<parallel>, #tpu.dimension_semantics<parallel>], iteration_bounds = array<i64: 2, 1>, scalar_prefetch = 0 : i64, scratch_operands = 0 : i64, tpu.core_type = #tpu.core_type<tc>, window_params = [{transform_indices = @transform_0, window_bounds = array<i64: 4, 16, 128>}, {transform_indices = @transform_1, window_bounds = array<i64: 16, 128>}, {transform_indices = @transform_2, window_bounds = array<i64: 4, 16, 128>}]} {
    %c0 = arith.constant 0 : index
    %c0_0 = arith.constant 0 : index
    %c0_1 = arith.constant 0 : index
    %0 = vector.load %arg2[%c0, %c0_0, %c0_1] : memref<4x16x128xf32, #tpu.memory_space<vmem>>, vector<4x16x128xf32>
    %c0_2 = arith.constant 0 : index
    %c0_3 = arith.constant 0 : index
    %1 = vector.load %arg3[%c0_2, %c0_3] : memref<16x128xf32, #tpu.memory_space<vmem>>, vector<16x128xf32>
    %2 = vector.shape_cast %1 : vector<16x128xf32> to vector<1x16x128xf32>
    %3 = vector.broadcast %2 : vector<1x16x128xf32> to vector<4x16x128xf32>
    %4 = arith.addf %0, %3 : vector<4x16x128xf32>
    %c0_4 = arith.constant 0 : index
    %c0_5 = arith.constant 0 : index
    %c0_6 = arith.constant 0 : index
    %5 = vector.load %arg4[%c0_4, %c0_5, %c0_6] : memref<4x16x128xf32, #tpu.memory_space<vmem>>, vector<4x16x128xf32>
    tpu.vector_store %arg4[%c0_4, %c0_5, %c0_6], %4 {strides = array<i32>} : memref<4x16x128xf32, #tpu.memory_space<vmem>>, vector<4x16x128xf32>,
    return
  }
  func.func @transform_0(%arg0: i32, %arg1: i32) -> (i32, i32, i32) {
    %c0_i32 = arith.constant 0 : i32
    %c0_i32_0 = arith.constant 0 : i32
    return %arg0, %arg1, %c0_i32 : i32, i32, i32
  }
  func.func @transform_1(%arg0: i32, %arg1: i32) -> (i32, i32) {
    %c0_i32 = arith.constant 0 : i32
    %c0_i32_0 = arith.constant 0 : i32
    return %arg1, %c0_i32 : i32, i32
  }
  func.func @transform_2(%arg0: i32, %arg1: i32) -> (i32, i32, i32) {
    %c0_i32 = arith.constant 0 : i32
    %c0_i32_0 = arith.constant 0 : i32
    return %arg0, %arg1, %c0_i32 : i32, i32, i32
  }
}

</mosaic_0001>

<llo_original>
// kernel: tpu_custom_call.1
$region0: #{tpu_custom_call.1}
  #allocation0 [shape = 'u32[]', space=smem, size = 0x4, offset = 0x4, fixed_abs, tag = 'smem constant byte address 0x4 - core index']
  #allocation1 [shape = 'u32[144,128]{1,0:T(1,128)}', space=vmem, size = 0x12000, scoped, tag = 'internal scratch']
  %s0 = inlined_call_operand.hbm [shape: f32[8,16,128], index: 0, kind: input, shape index: {}]
  %s1 = inlined_call_operand.hbm [shape: f32[16,128], index: 1, kind: input, shape index: {}]
  %s2 = inlined_call_operand.hbm [shape: f32[8,16,128], index: 2, kind: output, shape index: {}]
  %s3 = sld [smem:[#allocation0]]
  $region49: #{tpu_custom_call.1} parent=0
    _
  %s5 = ssub.s32 1, %s3
  %s6 = scalar_select 0, %s5, %s3
  $region1: #{tpu_custom_call.1} parent=0
    #allocation2 [shape = 'u8[65536]{0}', space=vmem, size = 0x10000, scoped, tag = 'input window, operand 0']
    #allocation3 [shape = 's32[2]{0}', space=sflag, size = 0x8, scoped, tag = 'scoped memory for tpu_custom_call.1']
    #allocation4 [shape = 's32[2]{0}', space=sflag, size = 0x8, scoped, tag = 'scoped memory for tpu_custom_call.1']
    #allocation5 [shape = 'u8[8192]{0}', space=vmem, size = 0x2000, scoped, tag = 'input window, operand 1, single buffered']
    #allocation6 [shape = 's32[1]{0}', space=sflag, size = 0x4, scoped, tag = 'scoped memory for tpu_custom_call.1']
    #allocation7 [shape = 'u8[65536]{0}', space=vmem, size = 0x10000, scoped, tag = 'output window, operand 0']
    %7 = vsyncpa [#allocation3], 0
    %s8 = scalar_lea.sflag [#allocation3], 1
    %9 = vsyncpa %s8, 0
    %10 = vsyncpa [#allocation6], 0
    %11 = vsyncpa [#allocation4], 0
    %s12 = scalar_lea.sflag [#allocation4], 1
    %13 = vsyncpa %s12, 0
    loop: start=0, step=1, limit=4
    $region2: #{tpu_custom_call.1} parent=1 // loop_pre_header
      _
    $region3: #{tpu_custom_call.1} parent=1 // loop_header
      %s15 = sphi 0, %s19
      %p16 = scmp.ge.s32.totalorder %s15, 4
      %s22 = sphi 0, %s34
      %s23 = sphi 0, %s30
      %s24 = sphi 0, %s22
      %s25 = sphi 0, %s23
      %s26 = sphi 0, %s24
      %s27 = sphi 0, %s25
      %s39 = sphi 0, %s41
      %s42 = sphi 0, %s39
      %s43 = sphi 0, %s42
      %s59 = sphi 0, %s43
      %s65 = sphi 0, %s67
      %s68 = sphi 0, %s65
      %s69 = sphi 0, %s68
      %s85 = sphi 0, %s69
      %s93 = sphi 0, %s95
      %s96 = sphi 0, %s93
      %s97 = sphi 0, %s96
      %s113 = sphi 0, %s97
    $region4: #{tpu_custom_call.1} parent=1 // loop_header_branch
      %18 = sbr.rel (%p16) target = $region8
    $region5: #{tpu_custom_call.1} parent=1 // loop_body
      %s20 = ssub.s32 %s15, 1
      %s21 = ssub.s32 %s15, 2
      %s28 = sadd.s32 1, %s23
      %p29 = scmp.ge.s32.totalorder %s28, 1
      %s30 = scalar_select %p29, 0, %s28
      %s31 = sadd.s32 1, %s22
      %s32 = scalar_select %p29, %s31, %s22
      %p33 = scmp.ge.s32.totalorder %s32, 2
      %s34 = scalar_select %p33, 0, %s32
      %s35 = ssub.s32 %s22, %s34
      %s36 = ssub.s32 %s23, %s30
      %s37 = sor.u32 %s35, %s36
      %p38 = scmp.eq.s32.totalorder %s37, 0
      %s40 = sadd.s32 %s39, 1
      %s41 = scalar_select %p38, %s39, %s40
      %p44 = pneg %p38
      %p45 = scmp.eq.s32.totalorder %s15, 1
      %p46 = por %p44, %p45
      %p47 = scmp.ne.s32.totalorder %s39, %s42
      %p48 = scmp.eq.s32.totalorder %s15, 0
      %p49 = por %p47, %p48
      %p50 = scmp.ne.s32.totalorder %s39, %s42
      %p51 = scmp.eq.s32.totalorder %s20, 1
      %p52 = por %p50, %p51
      %p53 = scmp.ne.s32.totalorder %s42, %s43
      %p54 = scmp.eq.s32.totalorder %s20, 0
      %p55 = por %p53, %p54
      %p56 = scmp.ne.s32.totalorder %s42, %s43
      %p57 = scmp.eq.s32.totalorder %s21, 1
      %p58 = por %p56, %p57
      %p60 = scmp.ne.s32.totalorder %s43, %s59
      %p61 = scmp.eq.s32.totalorder %s21, 0
      %p62 = por %p60, %p61
      %s63 = ssub.s32 %s23, %s30
      %p64 = scmp.eq.s32.totalorder %s63, 0
      %s66 = sadd.s32 %s65, 1
      %s67 = scalar_select %p64, %s65, %s66
      %p70 = pneg %p64
      %p71 = scmp.eq.s32.totalorder %s15, 1
      %p72 = por %p70, %p71
      %p73 = scmp.ne.s32.totalorder %s65, %s68
      %p74 = scmp.eq.s32.totalorder %s15, 0
      %p75 = por %p73, %p74
      %p76 = scmp.ne.s32.totalorder %s65, %s68
      %p77 = scmp.eq.s32.totalorder %s20, 1
      %p78 = por %p76, %p77
      %p79 = scmp.ne.s32.totalorder %s68, %s69
      %p80 = scmp.eq.s32.totalorder %s20, 0
      %p81 = por %p79, %p80
      %p82 = scmp.ne.s32.totalorder %s68, %s69
      %p83 = scmp.eq.s32.totalorder %s21, 1
      %p84 = por %p82, %p83
      %p86 = scmp.ne.s32.totalorder %s69, %s85
      %p87 = scmp.eq.s32.totalorder %s21, 0
      %p88 = por %p86, %p87
      %s89 = ssub.s32 %s22, %s34
      %s90 = ssub.s32 %s23, %s30
      %s91 = sor.u32 %s89, %s90
      %p92 = scmp.eq.s32.totalorder %s91, 0
      %s94 = sadd.s32 %s93, 1
      %s95 = scalar_select %p92, %s93, %s94
      %p98 = pneg %p92
      %p99 = scmp.eq.s32.totalorder %s15, 1
      %p100 = por %p98, %p99
      %p101 = scmp.ne.s32.totalorder %s93, %s96
      %p102 = scmp.eq.s32.totalorder %s15, 0
      %p103 = por %p101, %p102
      %p104 = scmp.ne.s32.totalorder %s93, %s96
      %p105 = scmp.eq.s32.totalorder %s20, 1
      %p106 = por %p104, %p105
      %p107 = scmp.ne.s32.totalorder %s96, %s97
      %p108 = scmp.eq.s32.totalorder %s20, 0
      %p109 = por %p107, %p108
      %p110 = scmp.ne.s32.totalorder %s96, %s97
      %p111 = scmp.eq.s32.totalorder %s21, 1
      %p112 = por %p110, %p111
      %p114 = scmp.ne.s32.totalorder %s97, %s113
      %p115 = scmp.eq.s32.totalorder %s21, 0
      %p116 = por %p114, %p115
      %p117 = scmp.le.s32.totalorder 1, %s15
      %p118 = scmp.lt.s32.totalorder %s15, 3
      %p119 = pnand %p117, %p118
      %p120 = pneg %p119
      // Predicated region
      $region9: #{tpu_custom_call.1} parent=5 // pred_check
        _
      $region10: #{tpu_custom_call.1} parent=5 // pred_check_branch
        %122 = sbr.rel (%p119) target = $region12
      $region11: #{tpu_custom_call.1} parent=5 // pred_region
        %s123 = ssub.s32 %s15, 1
        // Predicated region
        $region13: #{tpu_custom_call.1} parent=11 // pred_check
          %p124 = pneg %p81
        $region14: #{tpu_custom_call.1} parent=11 // pred_check_branch
          %126 = sbr.rel (%p124) target = $region16
        $region15: #{tpu_custom_call.1} parent=11 // pred_region
          %s127 = smul.u32 2, %s25
          %s129 = ssub.s32 256, 256
          %130 = vsyncadd [#allocation6], %s129
          %s131 = smul.addr %s127, 128
          %s132 = scalar_lea.hbm %s1, %s131
          %s133 = sshll.u32 [#allocation5], 4
          %s134 = int_to_ptr.vmem [resolvable:$true] %s133
          %139 = dma.hbm_to_vmem [thread:$0]  %s132, 256, %s134, [#allocation6], 128, 128, 8
        $region16: #{tpu_custom_call.1} parent=11 // pred_fallthru
          _
      $region12: #{tpu_custom_call.1} parent=5 // pred_fallthru
        _
      %p140 = scmp.lt.s32.totalorder %s15, 2
      // Predicated region
      $region17: #{tpu_custom_call.1} parent=5 // pred_check
        %p141 = pneg %p140
      $region18: #{tpu_custom_call.1} parent=5 // pred_check_branch
        %143 = sbr.rel (%p141) target = $region20
      $region19: #{tpu_custom_call.1} parent=5 // pred_region
        // Predicated region
        $region21: #{tpu_custom_call.1} parent=19 // pred_check
          %p144 = pneg %p49
        $region22: #{tpu_custom_call.1} parent=19 // pred_check_branch
          %146 = sbr.rel (%p144) target = $region24
        $region23: #{tpu_custom_call.1} parent=19 // pred_region
          %s147 = sand.u32 %s39, 1
          %s148 = scalar_lea.sflag [#allocation3], %s147
          %s149 = sand.u32 %s39, 1
          %s150 = smul.addr %s149, 64
          %s151 = scalar_lea.vmem [#allocation2], %s150
          %s152 = smul.u32 4, %s22
          %s153 = smul.u32 2, %s23
          %s155 = ssub.s32 1024, 1024
          %156 = vsyncadd %s148, %s155
          %s157 = smul.addr %s152, 2
          %s158 = sadd.s32 %s153, %s157
          %s159 = smul.addr %s158, 128
          %s160 = scalar_lea.hbm %s0, %s159
          %s161 = sshll.u32 %s151, 4
          %s162 = int_to_ptr.vmem [resolvable:$true] %s161
          %167 = dma.hbm_to_vmem [thread:$0]  %s160, 1024, %s162, %s148, 128, 128, 8
        $region24: #{tpu_custom_call.1} parent=19 // pred_fallthru
          _
      $region20: #{tpu_custom_call.1} parent=5 // pred_fallthru
        _
      %p168 = scmp.le.s32.totalorder 1, %s15
      %p169 = scmp.lt.s32.totalorder %s15, 3
      %p170 = pnand %p168, %p169
      %p171 = pneg %p170
      // Predicated region
      $region25: #{tpu_custom_call.1} parent=5 // pred_check
        _
      $region26: #{tpu_custom_call.1} parent=5 // pred_check_branch
        %173 = sbr.rel (%p170) target = $region28
      $region27: #{tpu_custom_call.1} parent=5 // pred_region
        %s174 = ssub.s32 %s15, 1
        %s175 = sand.u32 %s42, 1
        %s176 = scalar_lea.sflag [#allocation3], %s175
        %s177 = sand.u32 %s42, 1
        %s178 = smul.addr %s177, 64
        %s179 = scalar_lea.vmem [#allocation2], %s178
        // Predicated region
        $region29: #{tpu_custom_call.1} parent=27 // pred_check
          %p180 = pneg %p55
        $region30: #{tpu_custom_call.1} parent=27 // pred_check_branch
          %182 = sbr.rel (%p180) target = $region32
        $region31: #{tpu_custom_call.1} parent=27 // pred_region
          %183 = dma.done %s176, 1024
        $region32: #{tpu_custom_call.1} parent=27 // pred_fallthru
          _
        // Predicated region
        $region33: #{tpu_custom_call.1} parent=27 // pred_check
          %p184 = pneg %p81
        $region34: #{tpu_custom_call.1} parent=27 // pred_check_branch
          %186 = sbr.rel (%p184) target = $region36
        $region35: #{tpu_custom_call.1} parent=27 // pred_region
          %187 = dma.done [#allocation6], 256
        $region36: #{tpu_custom_call.1} parent=27 // pred_fallthru
          _
        %s188 = sand.u32 %s42, 1
        %s189 = scalar_lea.sflag [#allocation3], %s188
        %s190 = sand.u32 %s42, 1
        %s191 = smul.addr %s190, 64
        %s192 = scalar_lea.vmem [#allocation2], %s191
        %p193 = pneg %p55
        %p194 = pneg %p52
        %p195 = pneg %p81
        %p196 = pneg %p78
        %p197 = pneg %p109
        %p198 = pneg %p106
        %s199 = sand.u32 %s96, 1
        %s200 = scalar_lea.sflag [#allocation4], %s199
        %s201 = sand.u32 %s96, 1
        %s202 = smul.addr %s201, 64
        %s203 = scalar_lea.vmem [#allocation7], %s202
        %s204 = smul.u32 4, %s24
        %s205 = smul.u32 2, %s25
        %s206 = smul.u32 2, %s25
        %s207 = smul.u32 4, %s24
        %s208 = smul.u32 2, %s25
        %v209 = vld [vmem:[%s179] sm:$0xff]
        %v210 = vld [vmem:[%s179 + $0x8] sm:$0xff]
        %v211 = vld [vmem:[%s179 + $0x10] sm:$0xff]
        %v212 = vld [vmem:[%s179 + $0x18] sm:$0xff]
        %v213 = vld [vmem:[%s179 + $0x20] sm:$0xff]
        %v214 = vld [vmem:[%s179 + $0x28] sm:$0xff]
        %v215 = vld [vmem:[%s179 + $0x30] sm:$0xff]
        %v216 = vld [vmem:[%s179 + $0x38] sm:$0xff]
        %v217 = vld [vmem:[#allocation5] sm:$0xff]
        %v218 = vld [vmem:[#allocation5 + $0x8] sm:$0xff]
        %v219 = vadd.f32 %v209, %v217
        %v220 = vadd.f32 %v210, %v218
        %v221 = vadd.f32 %v211, %v217
        %v222 = vadd.f32 %v212, %v218
        %v223 = vadd.f32 %v213, %v217
        %v224 = vadd.f32 %v214, %v218
        %v225 = vadd.f32 %v215, %v217
        %v226 = vadd.f32 %v216, %v218
        %227 = vst [vmem:[%s203] sm:$0xff] %v219
        %228 = vst [vmem:[%s203 + $0x8] sm:$0xff] %v220
        %229 = vst [vmem:[%s203 + $0x10] sm:$0xff] %v221
        %230 = vst [vmem:[%s203 + $0x18] sm:$0xff] %v222
        %231 = vst [vmem:[%s203 + $0x20] sm:$0xff] %v223
        %232 = vst [vmem:[%s203 + $0x28] sm:$0xff] %v224
        %233 = vst [vmem:[%s203 + $0x30] sm:$0xff] %v225
        %234 = vst [vmem:[%s203 + $0x38] sm:$0xff] %v226
        %s235 = sand.u32 %s96, 1
        %s236 = scalar_lea.sflag [#allocation4], %s235
        %s237 = sand.u32 %s96, 1
        %s238 = smul.addr %s237, 64
        %s239 = scalar_lea.vmem [#allocation7], %s238
        // Predicated region
        $region37: #{tpu_custom_call.1} parent=27 // pred_check
          %p240 = pneg %p106
        $region38: #{tpu_custom_call.1} parent=27 // pred_check_branch
          %242 = sbr.rel (%p240) target = $region40
        $region39: #{tpu_custom_call.1} parent=27 // pred_region
          %s243 = smul.u32 4, %s24
          %s244 = smul.u32 2, %s25
          %s246 = ssub.s32 1024, 1024
          %247 = vsyncadd %s236, %s246
          %s248 = smul.addr %s243, 2
          %s249 = sadd.s32 %s244, %s248
          %s250 = smul.addr %s249, 128
          %s251 = scalar_lea.hbm %s2, %s250
          %s252 = sshll.u32 %s239, 4
          %s253 = int_to_ptr.vmem [resolvable:$true] %s252
          %258 = dma.vmem_to_hbm [thread:$0]  %s253, 1024, %s251, %s236, 128, 128, 8
        $region40: #{tpu_custom_call.1} parent=27 // pred_fallthru
          _
      $region28: #{tpu_custom_call.1} parent=5 // pred_fallthru
        _
      %p259 = scmp.le.s32.totalorder 2, %s15
      // Predicated region
      $region41: #{tpu_custom_call.1} parent=5 // pred_check
        %p260 = pneg %p259
      $region42: #{tpu_custom_call.1} parent=5 // pred_check_branch
        %262 = sbr.rel (%p260) target = $region44
      $region43: #{tpu_custom_call.1} parent=5 // pred_region
        %s263 = ssub.s32 %s15, 2
        // Predicated region
        $region45: #{tpu_custom_call.1} parent=43 // pred_check
          %p264 = pneg %p112
        $region46: #{tpu_custom_call.1} parent=43 // pred_check_branch
          %266 = sbr.rel (%p264) target = $region48
        $region47: #{tpu_custom_call.1} parent=43 // pred_region
          %s267 = sand.u32 %s97, 1
          %s268 = scalar_lea.sflag [#allocation4], %s267
          %s269 = sand.u32 %s97, 1
          %s270 = smul.addr %s269, 64
          %s271 = scalar_lea.vmem [#allocation7], %s270
          %272 = dma.done %s268, 1024
        $region48: #{tpu_custom_call.1} parent=43 // pred_fallthru
          _
      $region44: #{tpu_custom_call.1} parent=5 // pred_fallthru
        _
    $region6: #{tpu_custom_call.1} parent=1 // loop_footer
      %s19 = sadd.s32 1, %s15
    $region7: #{tpu_custom_call.1} parent=1 // loop_footer_branch
      %14 = sbr.rel target = $region3
    $region8: #{tpu_custom_call.1} parent=1 // loop_exit
      _
    %273 = vsyncpa [#allocation3], 1
    %s274 = scalar_lea.sflag [#allocation3], 1
    %275 = vsyncpa %s274, 1
    %276 = vsyncpa [#allocation6], 1
    %277 = vsyncpa [#allocation4], 1
    %s278 = scalar_lea.sflag [#allocation4], 1
    %279 = vsyncpa %s278, 1

</llo_original>
